<compile_context>
chip_gen: v7x
topology: tpu7x:2x2x1
jax: 0.10.0
libtpu: 0.0.40
codegen_flags: <defaults>
</compile_context>

<pallas_src>
import numpy as np
import jax
import jax.numpy as jnp
from jax.experimental import pallas as pl
from jax.experimental.pallas import tpu as pltpu

_MEAN = np.array([0.485, 0.456, 0.406], dtype=np.float32)
_STD = np.array([0.229, 0.224, 0.225], dtype=np.float32)


def _adaptive_pool_matrix(in_size: int, out_size: int) -> np.ndarray:
    """P[i, j] = 1/win_i if j is inside adaptive window i (torch floor/ceil)."""
    P = np.zeros((out_size, in_size), dtype=np.float32)
    for i in range(out_size):
        start = (i * in_size) // out_size
        end = -(-((i + 1) * in_size) // out_size)  # ceil
        P[i, start:end] = 1.0 / (end - start)
    return P


def _block_diag_height_matrix(tb_in: int, tb_out: int, scale: np.ndarray) -> np.ndarray:
    """Block-diagonal (C*tb_out, C*tb_in) height-pooling matrix with 1/std folded in."""
    C = scale.shape[0]
    ph = _adaptive_pool_matrix(tb_in, tb_out)                 # (tb_out, tb_in)
    out = np.zeros((C * tb_out, C * tb_in), dtype=np.float32)
    for c in range(C):
        out[c * tb_out:(c + 1) * tb_out, c * tb_in:(c + 1) * tb_in] = ph * scale[c]
    return out


def _vmem_capacity_bytes() -> int:
    try:
        cap = getattr(pltpu.get_tpu_info(), "vmem_capacity_bytes", None)
        if cap:
            return int(cap)
    except Exception:
        pass
    return 64 << 20  # conservative: v7x per-TensorCore VMEM


def _vmem_need_bytes(C, tb_in, tb_out, W_in, W_out, in_itemsize) -> int:
    f32 = 4
    need = 2 * C * tb_in * W_in * in_itemsize            # input block (double-buffered)
    need += 2 * C * tb_out * W_out * f32                 # output block (double-buffered)
    need += (W_in * W_out + (C * tb_out) * (C * tb_in)) * f32   # pwt + phs (single)
    need += C * tb_out * 128 * f32                       # bias column (lane-padded)
    # intermediates: f32 cast of the image block, width-pooled slab, output slab
    need += (C * tb_in * W_in + C * tb_in * W_out + C * tb_out * W_out) * f32
    return need


def _choose_h_band(H_in, H_out, W_in, W_out, C, in_itemsize, n_batch,
                   budget_bytes, forced_tb_out=None):
    """Pick an output-row band size tb_out (a divisor of H_out)."""
    def ok(tb_out):
        if tb_out <= 0 or H_out % tb_out:
            return False
        if tb_out == H_out:
            return True
        # Multi-band only when pooling windows align with band boundaries and
        # the blocks stay sublane-tile aligned for any dtype packing.
        if H_in % H_out:
            return False
        tb_in = tb_out * (H_in // H_out)
        return (tb_out % 8 == 0) and (tb_in % 32 == 0)

    if forced_tb_out is not None:
        tb_out = int(forced_tb_out)
        assert ok(tb_out), "invalid h_band_out for these shapes"
        tb_in = H_in if tb_out == H_out else tb_out * (H_in // H_out)
        return tb_out, tb_in, H_out // tb_out

    cands = [t for t in range(8, H_out, 8) if ok(t)]
    full_need = _vmem_need_bytes(C, H_in, H_out, W_in, W_out, in_itemsize)
    # Prefer the whole image per grid step unless it blows the VMEM budget or
    # the batch is too small to feed both v7x TensorCores.
    if (full_need <= budget_bytes and n_batch >= 2) or not cands:
        return H_out, H_in, 1
    k = H_in // H_out
    best = cands[0]
    for t in cands:  # ascending; keep the largest band that fits the budget
        if _vmem_need_bytes(C, t * k, t, W_in, W_out, in_itemsize) <= budget_bytes:
            best = t
    return best, best * k, H_out // best


def _vgg_preprocess_kernel(x_ref, pwt_ref, phs_ref, bias_ref, o_ref):
    # x_ref   : (C, tb_in, W_in) or (C*tb_in, W_in), native input dtype
    # pwt_ref : (W_in, W_out)  f32 width-pooling matrix (transposed), VMEM-resident
    # phs_ref : (C*tb_out, C*tb_in) f32 block-diag height pooling, 1/std folded in
    # bias_ref: (C*tb_out, 1) f32 per-row bias (mean/std)
    # o_ref   : (C, tb_out, W_out) or (C*tb_out, W_out) f32
    if len(x_ref.shape) == 3:
        C, tb_in, W_in = x_ref.shape
        x2d = x_ref[...].astype(jnp.float32).reshape(C * tb_in, W_in)
    else:
        x2d = x_ref[...].astype(jnp.float32)

    CHi, W_in = x2d.shape
    CHo = phs_ref.shape[0]
    W_out = pwt_ref.shape[1]

    # Pick the pooling order with fewer MACs (static shapes -> trace-time choice).
    cost_wfirst = CHi * W_out * (W_in + CHo)
    cost_hfirst = CHo * W_in * (CHi + W_out)
    if cost_wfirst <= cost_hfirst:
        xw = jnp.dot(x2d, pwt_ref[...], preferred_element_type=jnp.float32)      # (CHi, W_out)
        out2d = jnp.dot(phs_ref[...], xw, preferred_element_type=jnp.float32)    # (CHo, W_out)
    else:
        xh = jnp.dot(phs_ref[...], x2d, preferred_element_type=jnp.float32)      # (CHo, W_in)
        out2d = jnp.dot(xh, pwt_ref[...], preferred_element_type=jnp.float32)    # (CHo, W_out)

    out2d = out2d - bias_ref[...]                         # (x - mean)/std == x/std - mean/std
    if len(o_ref.shape) == 3:
        o_ref[...] = out2d.reshape(o_ref.shape).astype(o_ref.dtype)
    else:
        o_ref[...] = out2d.astype(o_ref.dtype)


def vgg_preprocess(image: jnp.ndarray, image_size: int, *, h_band_out=None) -> jnp.ndarray:
    """image: (N, 3, H, W) any dtype (kept native in HBM). Returns f32 (N, 3, S, S)."""
    N, C, H_in, W_in = image.shape
    assert C == 3, "VGG normalization expects 3 (RGB) channels"
    H_out = W_out = int(image_size)
    in_itemsize = jnp.dtype(image.dtype).itemsize

    cap = _vmem_capacity_bytes()
    budget = (cap - (8 << 20)) * 3 // 4
    tb_out, tb_in, n_bands = _choose_h_band(
        H_in, H_out, W_in, W_out, C, in_itemsize, N, budget, forced_tb_out=h_band_out)

    # Constant operands (single-buffered, whole-array VMEM residents).
    pwt = jnp.asarray(_adaptive_pool_matrix(W_in, W_out).T)                  # (W_in, W_out)
    phs = jnp.asarray(_block_diag_height_matrix(tb_in, tb_out, 1.0 / _STD))  # (C*tb_out, C*tb_in)
    bias_col = jnp.asarray(np.repeat(_MEAN / _STD, tb_out)[:, None].astype(np.float32))

    const_specs = [
        pl.BlockSpec(memory_space=pltpu.MemorySpace.VMEM),  # pwt
        pl.BlockSpec(memory_space=pltpu.MemorySpace.VMEM),  # phs
        pl.BlockSpec(memory_space=pltpu.MemorySpace.VMEM),  # bias column
    ]

    need = _vmem_need_bytes(C, tb_in, tb_out, W_in, W_out, in_itemsize)
    vmem_limit = int(min(max(need + (4 << 20), 32 << 20), cap - (8 << 20)))

    if n_bands == 1:
        # Flatten channels into rows on the HBM side (free for contiguous NCHW)
        # so the kernel is purely 2-D and the merge never needs a VMEM relayout.
        x_in = image.reshape(N, C * H_in, W_in)
        grid = (N,)
        in_specs = [pl.BlockSpec((None, C * H_in, W_in), lambda n: (n, 0, 0))] + const_specs
        out_specs = pl.BlockSpec((None, C * H_out, W_out), lambda n: (n, 0, 0))
        out_shape = jax.ShapeDtypeStruct((N, C * H_out, W_out), jnp.float32)
        dims = ("parallel",)
    else:
        # Row-band tiling: bands are aligned to adaptive-pooling windows
        # (H_in % H_out == 0), so every band is independent -> fully parallel.
        x_in = image
        grid = (N, n_bands)
        in_specs = [pl.BlockSpec((None, C, tb_in, W_in),
                                 lambda n, b: (n, 0, b, 0))] + const_specs
        out_specs = pl.BlockSpec((None, C, tb_out, W_out), lambda n, b: (n, 0, b, 0))
        out_shape = jax.ShapeDtypeStruct((N, C, H_out, W_out), jnp.float32)
        dims = ("parallel", "parallel")

    out = pl.pallas_call(
        _vgg_preprocess_kernel,
        out_shape=out_shape,
        grid=grid,
        in_specs=in_specs,
        out_specs=out_specs,
        compiler_params=pltpu.CompilerParams(
            dimension_semantics=dims,
            vmem_limit_bytes=vmem_limit),
    )(x_in, pwt, phs, bias_col)

    if n_bands == 1:
        out = out.reshape(N, C, H_out, W_out)   # free metadata reshape
    return out


def _reference(image, image_size):
    """Pure-JAX reference (divisible pooling case) for sanity checking."""
    x = image.astype(jnp.float32)
    N, C, H, W = x.shape
    kh, kw = H // image_size, W // image_size
    pooled = x.reshape(N, C, image_size, kh, image_size, kw).mean(axis=(3, 5))
    mean = jnp.asarray(_MEAN).reshape(1, 3, 1, 1)
    std = jnp.asarray(_STD).reshape(1, 3, 1, 1)
    return (pooled - mean) / std


if __name__ == "__main__":
    key = jax.random.PRNGKey(0)
    k1, k2 = jax.random.split(key)

    # Case 1: whole-image path (grid over batch only), flat 2-D kernel.
    x1 = jax.random.uniform(k1, (2, 3, 32, 32), dtype=jnp.float32)
    out1 = jax.block_until_ready(vgg_preprocess(x1, 16))
    np.testing.assert_allclose(np.asarray(out1), np.asarray(_reference(x1, 16)),
                               rtol=1e-4, atol=1e-4)

    # Case 2: row-band tiled path (grid = batch x H-bands), forced small bands.
    x2 = jax.random.uniform(k2, (1, 3, 64, 128), dtype=jnp.float32)
    out2 = jax.block_until_ready(vgg_preprocess(x2, 16, h_band_out=8))
    np.testing.assert_allclose(np.asarray(out2), np.asarray(_reference(x2, 16)),
                               rtol=1e-4, atol=1e-4)

    # Case 3: narrow native dtype (bf16) is read directly and cast in-kernel.
    x3 = x1.astype(jnp.bfloat16)
    out3 = jax.block_until_ready(vgg_preprocess(x3, 16))
    np.testing.assert_allclose(np.asarray(out3), np.asarray(_reference(x3, 16)),
                               rtol=1e-4, atol=1e-4)

    print("KERNEL_OK")
</pallas_src>

<mosaic_0001>
module attributes {stable_mosaic.version = 11 : i64} {
  func.func @_vgg_preprocess_kernel(%arg0: i32, %arg1: memref<1x96x32xf32, #tpu.memory_space<vmem>>, %arg2: memref<32x16xf32, #tpu.memory_space<vmem>>, %arg3: memref<48x96xf32, #tpu.memory_space<vmem>>, %arg4: memref<48x1xf32, #tpu.memory_space<vmem>>, %arg5: memref<1x48x16xf32, #tpu.memory_space<vmem>>) attributes {dimension_semantics = [#tpu.dimension_semantics<parallel>], iteration_bounds = array<i64: 2>, scalar_prefetch = 0 : i64, scratch_operands = 0 : i64, tpu.core_type = #tpu.core_type<tc>, window_params = [{transform_indices = @transform_0, window_bounds = array<i64: 1, 96, 32>}, {pipeline_mode = #tpu.pipeline_mode<synchronous>, transform_indices = @transform_1, window_bounds = array<i64: 32, 16>}, {pipeline_mode = #tpu.pipeline_mode<synchronous>, transform_indices = @transform_2, window_bounds = array<i64: 48, 96>}, {pipeline_mode = #tpu.pipeline_mode<synchronous>, transform_indices = @transform_3, window_bounds = array<i64: 48, 1>}, {transform_indices = @transform_4, window_bounds = array<i64: 1, 48, 16>}]} {
    %c0 = arith.constant 0 : index
    %c0_0 = arith.constant 0 : index
    %c0_1 = arith.constant 0 : index
    %0 = vector.load %arg1[%c0, %c0_0, %c0_1] : memref<1x96x32xf32, #tpu.memory_space<vmem>>, vector<1x96x32xf32>
    %1 = vector.shape_cast %0 : vector<1x96x32xf32> to vector<96x32xf32>
    %c0_2 = arith.constant 0 : index
    %c0_3 = arith.constant 0 : index
    %2 = vector.load %arg2[%c0_2, %c0_3] : memref<32x16xf32, #tpu.memory_space<vmem>>, vector<32x16xf32>
    %cst = arith.constant dense<0.000000e+00> : vector<96x16xf32>
    %3 = tpu.matmul %1, %2, %cst {dimension_numbers = #tpu.dot_dimension_numbers<[1], [0], [0], [1], [0, 0, 1, 1], [], []>} : vector<96x32xf32>, vector<32x16xf32>, vector<96x16xf32> -> vector<96x16xf32>
    %c0_4 = arith.constant 0 : index
    %c0_5 = arith.constant 0 : index
    %4 = vector.load %arg3[%c0_4, %c0_5] : memref<48x96xf32, #tpu.memory_space<vmem>>, vector<48x96xf32>
    %cst_6 = arith.constant dense<0.000000e+00> : vector<48x16xf32>
    %5 = tpu.matmul %4, %3, %cst_6 {dimension_numbers = #tpu.dot_dimension_numbers<[1], [0], [0], [1], [0, 0, 1, 1], [], []>} : vector<48x96xf32>, vector<96x16xf32>, vector<48x16xf32> -> vector<48x16xf32>
    %c0_7 = arith.constant 0 : index
    %c0_8 = arith.constant 0 : index
    %6 = vector.load %arg4[%c0_7, %c0_8] : memref<48x1xf32, #tpu.memory_space<vmem>>, vector<48x1xf32>
    %7 = vector.broadcast %6 : vector<48x1xf32> to vector<48x16xf32>
    %8 = arith.subf %5, %7 : vector<48x16xf32>
    %c0_9 = arith.constant 0 : index
    %c0_10 = arith.constant 0 : index
    %c0_11 = arith.constant 0 : index
    %9 = vector.load %arg5[%c0_9, %c0_10, %c0_11] : memref<1x48x16xf32, #tpu.memory_space<vmem>>, vector<1x48x16xf32>
    %10 = vector.shape_cast %9 : vector<1x48x16xf32> to vector<48x16xf32>
    %11 = vector.shape_cast %8 : vector<48x16xf32> to vector<1x48x16xf32>
    tpu.vector_store %arg5[%c0_9, %c0_10, %c0_11], %11 {strides = array<i32>} : memref<1x48x16xf32, #tpu.memory_space<vmem>>, vector<1x48x16xf32>,
    return
  }
  func.func @transform_0(%arg0: i32) -> (i32, i32, i32) {
    %c0_i32 = arith.constant 0 : i32
    %c0_i32_0 = arith.constant 0 : i32
    %c0_i32_1 = arith.constant 0 : i32
    return %arg0, %c0_i32, %c0_i32_0 : i32, i32, i32
  }
  func.func @transform_1(%arg0: i32) -> (i32, i32) {
    %c0_i32 = arith.constant 0 : i32
    %c0_i32_0 = arith.constant 0 : i32
    %c0_i32_1 = arith.constant 0 : i32
    return %c0_i32, %c0_i32_0 : i32, i32
  }
  func.func @transform_2(%arg0: i32) -> (i32, i32) {
    %c0_i32 = arith.constant 0 : i32
    %c0_i32_0 = arith.constant 0 : i32
    %c0_i32_1 = arith.constant 0 : i32
    return %c0_i32, %c0_i32_0 : i32, i32
  }
  func.func @transform_3(%arg0: i32) -> (i32, i32) {
    %c0_i32 = arith.constant 0 : i32
    %c0_i32_0 = arith.constant 0 : i32
    %c0_i32_1 = arith.constant 0 : i32
    return %c0_i32, %c0_i32_0 : i32, i32
  }
  func.func @transform_4(%arg0: i32) -> (i32, i32, i32) {
    %c0_i32 = arith.constant 0 : i32
    %c0_i32_0 = arith.constant 0 : i32
    %c0_i32_1 = arith.constant 0 : i32
    return %arg0, %c0_i32, %c0_i32_0 : i32, i32, i32
  }
}

</mosaic_0001>

<llo_original>
// kernel: tpu_custom_call.1
$region0: #{tpu_custom_call.1}
  #allocation0 [shape = 'u32[]', space=smem, size = 0x4, offset = 0x4, fixed_abs, tag = 'smem constant byte address 0x4 - core index']
  #allocation1 [shape = 'u32[144,128]{1,0:T(1,128)}', space=vmem, size = 0x12000, scoped, tag = 'internal scratch']
  %s0 = inlined_call_operand.vmem [shape: f32[2,96,32], index: 0, kind: input, shape index: {}]
  %s1 = inlined_call_operand.vmem [shape: f32[32,16], index: 1, kind: input, shape index: {}]
  %s2 = inlined_call_operand.vmem [shape: f32[48,96], index: 2, kind: input, shape index: {}]
  %s3 = inlined_call_operand.vmem [shape: f32[48,1], index: 3, kind: input, shape index: {}]
  %s4 = inlined_call_operand.vmem [shape: f32[2,48,16], index: 4, kind: output, shape index: {}]
  %s5 = sld [smem:[#allocation0]]
  $region49: #{tpu_custom_call.1} parent=0
    _
  %s7 = ssub.s32 1, %s5
  %s8 = scalar_select 0, %s7, %s5
  loop: start=0, step=1, limit=4
  $region2: #{tpu_custom_call.1} parent=0 // loop_pre_header
    _
  $region3: #{tpu_custom_call.1} parent=0 // loop_header
    %s10 = sphi 0, %s14
    %p11 = scmp.ge.s32.totalorder %s10, 4
    %s20 = sphi 0, %s22
    %s23 = sphi 0, %s20
    %s24 = sphi 0, %s23
    %s40 = sphi 0, %s24
    %s44 = sphi 0, %s44
    %s46 = sphi 0, %s44
    %s47 = sphi 0, %s46
    %s61 = sphi 0, %s47
    %s65 = sphi 0, %s65
    %s67 = sphi 0, %s65
    %s68 = sphi 0, %s67
    %s82 = sphi 0, %s68
    %s86 = sphi 0, %s86
    %s88 = sphi 0, %s86
    %s89 = sphi 0, %s88
    %s103 = sphi 0, %s89
    %s109 = sphi 0, %s111
    %s112 = sphi 0, %s109
    %s113 = sphi 0, %s112
    %s129 = sphi 0, %s113
  $region4: #{tpu_custom_call.1} parent=0 // loop_header_branch
    %13 = sbr.rel (%p11) target = $region8
  $region5: #{tpu_custom_call.1} parent=0 // loop_body
    %s15 = ssub.s32 %s10, 1
    %s16 = ssub.s32 %s10, 2
    %s17 = sadd.s32 %s10, 1
    %s18 = ssub.s32 %s10, %s17
    %p19 = scmp.eq.s32.totalorder %s18, 0
    %s21 = sadd.s32 %s20, 1
    %s22 = scalar_select %p19, %s20, %s21
    %p25 = pneg %p19
    %p26 = scmp.eq.s32.totalorder %s10, 1
    %p27 = por %p25, %p26
    %p28 = scmp.ne.s32.totalorder %s20, %s23
    %p29 = scmp.eq.s32.totalorder %s10, 0
    %p30 = por %p28, %p29
    %p31 = scmp.ne.s32.totalorder %s20, %s23
    %p32 = scmp.eq.s32.totalorder %s15, 1
    %p33 = por %p31, %p32
    %p34 = scmp.ne.s32.totalorder %s23, %s24
    %p35 = scmp.eq.s32.totalorder %s15, 0
    %p36 = por %p34, %p35
    %p37 = scmp.ne.s32.totalorder %s23, %s24
    %p38 = scmp.eq.s32.totalorder %s16, 1
    %p39 = por %p37, %p38
    %p41 = scmp.ne.s32.totalorder %s24, %s40
    %p42 = scmp.eq.s32.totalorder %s16, 0
    %p43 = por %p41, %p42
    %s45 = sadd.s32 %s44, 1
    %p48 = scmp.eq.s32.totalorder %s10, 1
    %p49 = scmp.ne.s32.totalorder %s44, %s46
    %p50 = scmp.eq.s32.totalorder %s10, 0
    %p51 = por %p49, %p50
    %p52 = scmp.ne.s32.totalorder %s44, %s46
    %p53 = scmp.eq.s32.totalorder %s15, 1
    %p54 = por %p52, %p53
    %p55 = scmp.ne.s32.totalorder %s46, %s47
    %p56 = scmp.eq.s32.totalorder %s15, 0
    %p57 = por %p55, %p56
    %p58 = scmp.ne.s32.totalorder %s46, %s47
    %p59 = scmp.eq.s32.totalorder %s16, 1
    %p60 = por %p58, %p59
    %p62 = scmp.ne.s32.totalorder %s47, %s61
    %p63 = scmp.eq.s32.totalorder %s16, 0
    %p64 = por %p62, %p63
    %s66 = sadd.s32 %s65, 1
    %p69 = scmp.eq.s32.totalorder %s10, 1
    %p70 = scmp.ne.s32.totalorder %s65, %s67
    %p71 = scmp.eq.s32.totalorder %s10, 0
    %p72 = por %p70, %p71
    %p73 = scmp.ne.s32.totalorder %s65, %s67
    %p74 = scmp.eq.s32.totalorder %s15, 1
    %p75 = por %p73, %p74
    %p76 = scmp.ne.s32.totalorder %s67, %s68
    %p77 = scmp.eq.s32.totalorder %s15, 0
    %p78 = por %p76, %p77
    %p79 = scmp.ne.s32.totalorder %s67, %s68
    %p80 = scmp.eq.s32.totalorder %s16, 1
    %p81 = por %p79, %p80
    %p83 = scmp.ne.s32.totalorder %s68, %s82
    %p84 = scmp.eq.s32.totalorder %s16, 0
    %p85 = por %p83, %p84
    %s87 = sadd.s32 %s86, 1
    %p90 = scmp.eq.s32.totalorder %s10, 1
    %p91 = scmp.ne.s32.totalorder %s86, %s88
    %p92 = scmp.eq.s32.totalorder %s10, 0
    %p93 = por %p91, %p92
    %p94 = scmp.ne.s32.totalorder %s86, %s88
    %p95 = scmp.eq.s32.totalorder %s15, 1
    %p96 = por %p94, %p95
    %p97 = scmp.ne.s32.totalorder %s88, %s89
    %p98 = scmp.eq.s32.totalorder %s15, 0
    %p99 = por %p97, %p98
    %p100 = scmp.ne.s32.totalorder %s88, %s89
    %p101 = scmp.eq.s32.totalorder %s16, 1
    %p102 = por %p100, %p101
    %p104 = scmp.ne.s32.totalorder %s89, %s103
    %p105 = scmp.eq.s32.totalorder %s16, 0
    %p106 = por %p104, %p105
    %s107 = ssub.s32 %s10, %s17
    %p108 = scmp.eq.s32.totalorder %s107, 0
    %s110 = sadd.s32 %s109, 1
    %s111 = scalar_select %p108, %s109, %s110
    %p114 = pneg %p108
    %p115 = scmp.eq.s32.totalorder %s10, 1
    %p116 = por %p114, %p115
    %p117 = scmp.ne.s32.totalorder %s109, %s112
    %p118 = scmp.eq.s32.totalorder %s10, 0
    %p119 = por %p117, %p118
    %p120 = scmp.ne.s32.totalorder %s109, %s112
    %p121 = scmp.eq.s32.totalorder %s15, 1
    %p122 = por %p120, %p121
    %p123 = scmp.ne.s32.totalorder %s112, %s113
    %p124 = scmp.eq.s32.totalorder %s15, 0
    %p125 = por %p123, %p124
    %p126 = scmp.ne.s32.totalorder %s112, %s113
    %p127 = scmp.eq.s32.totalorder %s16, 1
    %p128 = por %p126, %p127
    %p130 = scmp.ne.s32.totalorder %s113, %s129
    %p131 = scmp.eq.s32.totalorder %s16, 0
    %p132 = por %p130, %p131
    %p133 = scmp.le.s32.totalorder 1, %s10
    %p134 = scmp.lt.s32.totalorder %s10, 3
    %p135 = pnand %p133, %p134
    %p136 = pneg %p135
    // Predicated region
    $region9: #{tpu_custom_call.1} parent=5 // pred_check
      _
    $region10: #{tpu_custom_call.1} parent=5 // pred_check_branch
      %138 = sbr.rel (%p135) target = $region12
    $region11: #{tpu_custom_call.1} parent=5 // pred_region
      %s139 = ssub.s32 %s10, 1
      // Predicated region
      $region13: #{tpu_custom_call.1} parent=11 // pred_check
        %p140 = pneg %p57
      $region14: #{tpu_custom_call.1} parent=11 // pred_check_branch
        %142 = sbr.rel (%p140) target = $region16
      $region15: #{tpu_custom_call.1} parent=11 // pred_region
        _
      $region16: #{tpu_custom_call.1} parent=11 // pred_fallthru
        _
      // Predicated region
      $region17: #{tpu_custom_call.1} parent=11 // pred_check
        %p143 = pneg %p78
      $region18: #{tpu_custom_call.1} parent=11 // pred_check_branch
        %145 = sbr.rel (%p143) target = $region20
      $region19: #{tpu_custom_call.1} parent=11 // pred_region
        _
      $region20: #{tpu_custom_call.1} parent=11 // pred_fallthru
        _
      // Predicated region
      $region21: #{tpu_custom_call.1} parent=11 // pred_check
        %p146 = pneg %p99
      $region22: #{tpu_custom_call.1} parent=11 // pred_check_branch
        %148 = sbr.rel (%p146) target = $region24
      $region23: #{tpu_custom_call.1} parent=11 // pred_region
        _
      $region24: #{tpu_custom_call.1} parent=11 // pred_fallthru
        _
    $region12: #{tpu_custom_call.1} parent=5 // pred_fallthru
      _
    %p149 = scmp.lt.s32.totalorder %s10, 2
    // Predicated region
    $region25: #{tpu_custom_call.1} parent=5 // pred_check
      %p150 = pneg %p149
    $region26: #{tpu_custom_call.1} parent=5 // pred_check_branch
      %152 = sbr.rel (%p150) target = $region28
    $region27: #{tpu_custom_call.1} parent=5 // pred_region
      // Predicated region
      $region29: #{tpu_custom_call.1} parent=27 // pred_check
        %p153 = pneg %p30
      $region30: #{tpu_custom_call.1} parent=27 // pred_check_branch
        %155 = sbr.rel (%p153) target = $region32
      $region31: #{tpu_custom_call.1} parent=27 // pred_region
        %p156 = scmp.lt.s32.totalorder %s10, 1
        %s157 = scalar_select %p156, %s10, 1
        %s158 = smul.addr %s157, 12
        %s159 = smul.addr %s158, 8
        %s160 = scalar_lea.vmem %s0, %s159
      $region32: #{tpu_custom_call.1} parent=27 // pred_fallthru
        _
    $region28: #{tpu_custom_call.1} parent=5 // pred_fallthru
      _
    %p161 = scmp.le.s32.totalorder 1, %s10
    %p162 = scmp.lt.s32.totalorder %s10, 3
    %p163 = pnand %p161, %p162
    %p164 = pneg %p163
    // Predicated region
    $region33: #{tpu_custom_call.1} parent=5 // pred_check
      _
    $region34: #{tpu_custom_call.1} parent=5 // pred_check_branch
      %166 = sbr.rel (%p163) target = $region36
    $region35: #{tpu_custom_call.1} parent=5 // pred_region
      %s167 = ssub.s32 %s10, 1
      %p168 = scmp.lt.s32.totalorder %s15, 1
      %s169 = scalar_select %p168, %s15, 1
      %s170 = smul.addr %s169, 12
      %s171 = smul.addr %s170, 8
      %s172 = scalar_lea.vmem %s0, %s171
      %p173 = pneg %p36
      %p174 = pneg %p33
      %p175 = pneg %p57
      %p176 = pneg %p54
      %p177 = pneg %p78
      %p178 = pneg %p75
      %p179 = pneg %p99
      %p180 = pneg %p96
      %p181 = pneg %p125
      %p182 = pneg %p122
      %p183 = scmp.lt.s32.totalorder %s15, 1
      %s184 = scalar_select %p183, %s15, 1
      %s185 = smul.addr %s184, 6
      %s186 = smul.addr %s185, 8
      %s187 = scalar_lea.vmem %s4, %s186
      %p188 = scmp.lt.s32.totalorder %s15, 1
      %s189 = scalar_select %p188, %s15, 1
      %s190 = smul.addr %s189, 12
      %s191 = smul.addr %s190, 8
      %s192 = scalar_lea.vmem %s0, %s191
      %p193 = scmp.lt.s32.totalorder %s15, 1
      %s194 = scalar_select %p193, %s15, 1
      %s195 = smul.addr %s194, 6
      %s196 = smul.addr %s195, 8
      %s197 = scalar_lea.vmem %s4, %s196
      %v198 = vld [vmem:[%s192] sm:$0xff]
      %v199 = vld [vmem:[%s192 + $0x8] sm:$0xff]
      %v200 = vld [vmem:[%s192 + $0x10] sm:$0xff]
      %v201 = vld [vmem:[%s192 + $0x18] sm:$0xff]
      %v202 = vld [vmem:[%s192 + $0x20] sm:$0xff]
      %v203 = vld [vmem:[%s192 + $0x28] sm:$0xff]
      %v204 = vld [vmem:[%s192 + $0x30] sm:$0xff]
      %v205 = vld [vmem:[%s192 + $0x38] sm:$0xff]
      %v206 = vld [vmem:[%s192 + $0x40] sm:$0xff]
      %v207 = vld [vmem:[%s192 + $0x48] sm:$0xff]
      %v208 = vld [vmem:[%s192 + $0x50] sm:$0xff]
      %v209 = vld [vmem:[%s192 + $0x58] sm:$0xff]
      %v210 = vld [vmem:[%s1] sm:$0xff]
      %v211 = vld [vmem:[%s1 + $0x8] sm:$0xff]
      %v212 = vld [vmem:[%s1 + $0x10] sm:$0xff]
      %v213 = vld [vmem:[%s1 + $0x18] sm:$0xff]
      %vm214 = vcmask 261120
      %v216 = vsel %vm214, %v198, 0
      %v219 = vsel %vm214, %v199, 0
      %v222 = vsel %vm214, %v200, 0
      %v225 = vsel %vm214, %v201, 0
      %v228 = vsel %vm214, %v202, 0
      %v231 = vsel %vm214, %v203, 0
      %v234 = vsel %vm214, %v204, 0
      %v237 = vsel %vm214, %v205, 0
      %v240 = vsel %vm214, %v206, 0
      %v243 = vsel %vm214, %v207, 0
      %v246 = vsel %vm214, %v208, 0
      %v249 = vsel %vm214, %v209, 0
      %251 = vmatprep.subr.mxu0 0.0
      %252 = vmatpush1.msra.mxu0 %v210
      %253 = vmatprep.subr.mxu0 0.0
      %254 = vmatpush1.msra.mxu0 %v211
      %255 = vmatprep.subr.mxu0 0.0
      %256 = vmatpush1.msra.mxu0 %v212
      %257 = vmatprep.subr.mxu0 0.0
      %258 = vmatpush1.msra.mxu0 %v213
      %259 = vmatprep.subr.mxu0 0.0
      %260 = vmatpush1.msra.mxu0 0.0
      %261 = vmatprep.subr.mxu0 0.0
      %262 = vmatpush1.msra.mxu0 0.0
      %263 = vmatprep.subr.mxu0 0.0
      %264 = vmatpush1.msra.mxu0 0.0
      %265 = vmatprep.subr.mxu0 0.0
      %266 = vmatpush1.msra.mxu0 0.0
      %267 = vmatprep.subr.mxu0 0.0
      %268 = vmatpush1.msra.mxu0 0.0
      %269 = vmatprep.subr.mxu0 0.0
      %270 = vmatpush1.msra.mxu0 0.0
      %271 = vmatprep.subr.mxu0 0.0
      %272 = vmatpush1.msra.mxu0 0.0
      %273 = vmatprep.subr.mxu0 0.0
      %274 = vmatpush1.msra.mxu0 0.0
      %275 = vmatprep.subr.mxu0 0.0
      %276 = vmatpush1.msra.mxu0 0.0
      %277 = vmatprep.subr.mxu0 0.0
      %278 = vmatpush1.msra.mxu0 0.0
      %279 = vmatprep.subr.mxu0 0.0
      %280 = vmatpush1.msra.mxu0 0.0
      %281 = vmatprep.subr.mxu0 0.0
      %282 = vmatpush1.msra.mxu0 0.0
      %283 = vmatprep.subr.mxu0 0.0
      %284 = vmatpush1.msra.mxu0 0.0
      %285 = vmatprep.subr.mxu0 0.0
      %286 = vmatpush1.msra.mxu0 0.0
      %287 = vmatprep.subr.mxu0 0.0
      %288 = vmatpush1.msra.mxu0 0.0
      %289 = vmatprep.subr.mxu0 0.0
      %290 = vmatpush1.msra.mxu0 0.0
      %291 = vmatprep.subr.mxu0 0.0
      %292 = vmatpush1.msra.mxu0 0.0
      %293 = vmatprep.subr.mxu0 0.0
      %294 = vmatpush1.msra.mxu0 0.0
      %295 = vmatprep.subr.mxu0 0.0
      %296 = vmatpush1.msra.mxu0 0.0
      %297 = vmatprep.subr.mxu0 0.0
      %298 = vmatpush1.msra.mxu0 0.0
      %299 = vmatprep.subr.mxu0 0.0
      %300 = vmatpush1.msra.mxu0 0.0
      %301 = vmatprep.subr.mxu0 0.0
      %302 = vmatpush1.msra.mxu0 0.0
      %303 = vmatprep.subr.mxu0 0.0
      %304 = vmatpush1.msra.mxu0 0.0
      %305 = vmatprep.subr.mxu0 0.0
      %306 = vmatpush1.msra.mxu0 0.0
      %307 = vmatprep.subr.mxu0 0.0
      %308 = vmatpush1.msra.mxu0 0.0
      %309 = vmatprep.subr.mxu0 0.0
      %310 = vmatpush1.msra.mxu0 0.0
      %311 = vmatprep.subr.mxu0 0.0
      %312 = vmatpush1.msra.mxu0 0.0
      %313 = vmatprep.subr.mxu0 0.0
      %314 = vmatpush1.msra.mxu0 0.0
      %315 = vmatprep.mubr.f32.mxu0 0.0
      %316 = vmatmul.mubr.f32.gmra.mrb[0].mxu0 %v216
      %v317 = vpop.f32.mrb[0].mxu0
      %v318 = vadd.f32 0.0, %v317
      %v319 = vpop.f32.mrb[0].mxu0
      %320 = vmatprep.mubr.f32.mxu0 0.0
      %321 = vmatmul.mubr.f32.gmra.mrb[0].mxu0 %v219
      %v322 = vpop.f32.mrb[0].mxu0
      %v323 = vadd.f32 0.0, %v322
      %v324 = vpop.f32.mrb[0].mxu0
      %325 = vmatprep.mubr.f32.mxu0 0.0
      %326 = vmatmul.mubr.f32.gmra.mrb[0].mxu0 %v222
      %v327 = vpop.f32.mrb[0].mxu0
      %v328 = vadd.f32 0.0, %v327
      %v329 = vpop.f32.mrb[0].mxu0
      %330 = vmatprep.mubr.f32.mxu0 0.0
      %331 = vmatmul.mubr.f32.gmra.mrb[0].mxu0 %v225
      %v332 = vpop.f32.mrb[0].mxu0
      %v333 = vadd.f32 0.0, %v332
      %v334 = vpop.f32.mrb[0].mxu0
      %335 = vmatprep.mubr.f32.mxu0 0.0
      %336 = vmatmul.mubr.f32.gmra.mrb[0].mxu0 %v228
      %v337 = vpop.f32.mrb[0].mxu0
      %v338 = vadd.f32 0.0, %v337
      %v339 = vpop.f32.mrb[0].mxu0
      %340 = vmatprep.mubr.f32.mxu0 0.0
      %341 = vmatmul.mubr.f32.gmra.mrb[0].mxu0 %v231
      %v342 = vpop.f32.mrb[0].mxu0
      %v343 = vadd.f32 0.0, %v342
      %v344 = vpop.f32.mrb[0].mxu0
      %345 = vmatprep.mubr.f32.mxu0 0.0
      %346 = vmatmul.mubr.f32.gmra.mrb[0].mxu0 %v234
      %v347 = vpop.f32.mrb[0].mxu0
      %v348 = vadd.f32 0.0, %v347
      %v349 = vpop.f32.mrb[0].mxu0
      %350 = vmatprep.mubr.f32.mxu0 0.0
      %351 = vmatmul.mubr.f32.gmra.mrb[0].mxu0 %v237
      %v352 = vpop.f32.mrb[0].mxu0
      %v353 = vadd.f32 0.0, %v352
      %v354 = vpop.f32.mrb[0].mxu0
      %355 = vmatprep.mubr.f32.mxu0 0.0
      %356 = vmatmul.mubr.f32.gmra.mrb[0].mxu0 %v240
      %v357 = vpop.f32.mrb[0].mxu0
      %v358 = vadd.f32 0.0, %v357
      %v359 = vpop.f32.mrb[0].mxu0
      %360 = vmatprep.mubr.f32.mxu0 0.0
      %361 = vmatmul.mubr.f32.gmra.mrb[0].mxu0 %v243
      %v362 = vpop.f32.mrb[0].mxu0
      %v363 = vadd.f32 0.0, %v362
      %v364 = vpop.f32.mrb[0].mxu0
      %365 = vmatprep.mubr.f32.mxu0 0.0
      %366 = vmatmul.mubr.f32.gmra.mrb[0].mxu0 %v246
      %v367 = vpop.f32.mrb[0].mxu0
      %v368 = vadd.f32 0.0, %v367
      %v369 = vpop.f32.mrb[0].mxu0
      %370 = vmatprep.mubr.f32.mxu0 0.0
      %371 = vmatmul.mubr.f32.gmra.mrb[0].mxu0 %v249
      %v372 = vpop.f32.mrb[0].mxu0
      %v373 = vadd.f32 0.0, %v372
      %v374 = vpop.f32.mrb[0].mxu0
      %375 = vdwg.mxu0
      %v376 = vld [vmem:[%s2] sm:$0xff]
      %v377 = vld [vmem:[%s2 + $0x8] sm:$0xff]
      %v378 = vld [vmem:[%s2 + $0x10] sm:$0xff]
      %v379 = vld [vmem:[%s2 + $0x18] sm:$0xff]
      %v380 = vld [vmem:[%s2 + $0x20] sm:$0xff]
      %v381 = vld [vmem:[%s2 + $0x28] sm:$0xff]
      %vm382 = vcmask 785408
      %v384 = vsel %vm382, %v376, 0
      %v387 = vsel %vm382, %v377, 0
      %v390 = vsel %vm382, %v378, 0
      %v393 = vsel %vm382, %v379, 0
      %v396 = vsel %vm382, %v380, 0
      %v399 = vsel %vm382, %v381, 0
      %401 = vmatprep.subr.mxu0 0.0
      %402 = vmatpush1.msra.mxu0 %v318
      %403 = vmatprep.subr.mxu0 0.0
      %404 = vmatpush1.msra.mxu0 %v323
      %405 = vmatprep.subr.mxu0 0.0
      %406 = vmatpush1.msra.mxu0 %v328
      %407 = vmatprep.subr.mxu0 0.0
      %408 = vmatpush1.msra.mxu0 %v333
      %409 = vmatprep.subr.mxu0 0.0
      %410 = vmatpush1.msra.mxu0 %v338
      %411 = vmatprep.subr.mxu0 0.0
      %412 = vmatpush1.msra.mxu0 %v343
      %413 = vmatprep.subr.mxu0 0.0
      %414 = vmatpush1.msra.mxu0 %v348
      %415 = vmatprep.subr.mxu0 0.0
      %416 = vmatpush1.msra.mxu0 %v353
      %417 = vmatprep.subr.mxu0 0.0
      %418 = vmatpush1.msra.mxu0 %v358
      %419 = vmatprep.subr.mxu0 0.0
      %420 = vmatpush1.msra.mxu0 %v363
      %421 = vmatprep.subr.mxu0 0.0
      %422 = vmatpush1.msra.mxu0 %v368
      %423 = vmatprep.subr.mxu0 0.0
      %424 = vmatpush1.msra.mxu0 %v373
      %425 = vmatprep.subr.mxu0 0.0
      %426 = vmatpush1.msra.mxu0 0.0
      %427 = vmatprep.subr.mxu0 0.0
      %428 = vmatpush1.msra.mxu0 0.0
      %429 = vmatprep.subr.mxu0 0.0
      %430 = vmatpush1.msra.mxu0 0.0
      %431 = vmatprep.subr.mxu0 0.0
      %432 = vmatpush1.msra.mxu0 0.0
      %433 = vmatprep.subr.mxu0 0.0
      %434 = vmatpush1.msra.mxu0 0.0
      %435 = vmatprep.subr.mxu0 0.0
      %436 = vmatpush1.msra.mxu0 0.0
      %437 = vmatprep.subr.mxu0 0.0
      %438 = vmatpush1.msra.mxu0 0.0
      %439 = vmatprep.subr.mxu0 0.0
      %440 = vmatpush1.msra.mxu0 0.0
      %441 = vmatprep.subr.mxu0 0.0
      %442 = vmatpush1.msra.mxu0 0.0
      %443 = vmatprep.subr.mxu0 0.0
      %444 = vmatpush1.msra.mxu0 0.0
      %445 = vmatprep.subr.mxu0 0.0
      %446 = vmatpush1.msra.mxu0 0.0
      %447 = vmatprep.subr.mxu0 0.0
      %448 = vmatpush1.msra.mxu0 0.0
      %449 = vmatprep.subr.mxu0 0.0
      %450 = vmatpush1.msra.mxu0 0.0
      %451 = vmatprep.subr.mxu0 0.0
      %452 = vmatpush1.msra.mxu0 0.0
      %453 = vmatprep.subr.mxu0 0.0
      %454 = vmatpush1.msra.mxu0 0.0
      %455 = vmatprep.subr.mxu0 0.0
      %456 = vmatpush1.msra.mxu0 0.0
      %457 = vmatprep.subr.mxu0 0.0
      %458 = vmatpush1.msra.mxu0 0.0
      %459 = vmatprep.subr.mxu0 0.0
      %460 = vmatpush1.msra.mxu0 0.0
      %461 = vmatprep.subr.mxu0 0.0
      %462 = vmatpush1.msra.mxu0 0.0
      %463 = vmatprep.subr.mxu0 0.0
      %464 = vmatpush1.msra.mxu0 0.0
      %465 = vmatprep.mubr.f32.mxu0 0.0
      %466 = vmatmul.mubr.f32.gmra.mrb[0].mxu0 %v384
      %v467 = vpop.f32.mrb[0].mxu0
      %v468 = vadd.f32 0.0, %v467
      %v469 = vpop.f32.mrb[0].mxu0
      %470 = vmatprep.mubr.f32.mxu0 0.0
      %471 = vmatmul.mubr.f32.gmra.mrb[0].mxu0 %v387
      %v472 = vpop.f32.mrb[0].mxu0
      %v473 = vadd.f32 0.0, %v472
      %v474 = vpop.f32.mrb[0].mxu0
      %475 = vmatprep.mubr.f32.mxu0 0.0
      %476 = vmatmul.mubr.f32.gmra.mrb[0].mxu0 %v390
      %v477 = vpop.f32.mrb[0].mxu0
      %v478 = vadd.f32 0.0, %v477
      %v479 = vpop.f32.mrb[0].mxu0
      %480 = vmatprep.mubr.f32.mxu0 0.0
      %481 = vmatmul.mubr.f32.gmra.mrb[0].mxu0 %v393
      %v482 = vpop.f32.mrb[0].mxu0
      %v483 = vadd.f32 0.0, %v482
      %v484 = vpop.f32.mrb[0].mxu0
      %485 = vmatprep.mubr.f32.mxu0 0.0
      %486 = vmatmul.mubr.f32.gmra.mrb[0].mxu0 %v396
      %v487 = vpop.f32.mrb[0].mxu0
      %v488 = vadd.f32 0.0, %v487
      %v489 = vpop.f32.mrb[0].mxu0
      %490 = vmatprep.mubr.f32.mxu0 0.0
      %491 = vmatmul.mubr.f32.gmra.mrb[0].mxu0 %v399
      %v492 = vpop.f32.mrb[0].mxu0
      %v493 = vadd.f32 0.0, %v492
      %v494 = vpop.f32.mrb[0].mxu0
      %495 = vdwg.mxu0
      %v496 = vld [vmem:[%s3] sm:$0xff]
      %v497 = vld [vmem:[%s3 + $0x8] sm:$0xff]
      %v498 = vld [vmem:[%s3 + $0x10] sm:$0xff]
      %v499 = vld [vmem:[%s3 + $0x18] sm:$0xff]
      %v500 = vld [vmem:[%s3 + $0x20] sm:$0xff]
      %v501 = vld [vmem:[%s3 + $0x28] sm:$0xff]
      %503 = vset.pattern.permute.xlu0 0
      %504 = vperm.xlu0 %503, %v496
      %v505 = vpop.permute.xlu0 %504
      %508 = vset.pattern.permute.xlu0 0
      %509 = vperm.xlu0 %508, %v497
      %v510 = vpop.permute.xlu0 %509
      %513 = vset.pattern.permute.xlu0 0
      %514 = vperm.xlu0 %513, %v498
      %v515 = vpop.permute.xlu0 %514
      %518 = vset.pattern.permute.xlu0 0
      %519 = vperm.xlu0 %518, %v499
      %v520 = vpop.permute.xlu0 %519
      %523 = vset.pattern.permute.xlu0 0
      %524 = vperm.xlu0 %523, %v500
      %v525 = vpop.permute.xlu0 %524
      %528 = vset.pattern.permute.xlu0 0
      %529 = vperm.xlu0 %528, %v501
      %v530 = vpop.permute.xlu0 %529
      %v532 = vsub.f32 %v468, %v505
      %v533 = vsub.f32 %v473, %v510
      %v534 = vsub.f32 %v478, %v515
      %v535 = vsub.f32 %v483, %v520
      %v536 = vsub.f32 %v488, %v525
      %v537 = vsub.f32 %v493, %v530
      %vm538 = vcmask 130048
      %539 = vst.msk [vmem:[%s197] sm:$0xff] %vm538, %v532
      %540 = vst.msk [vmem:[%s197 + $0x8] sm:$0xff] %vm538, %v533
      %541 = vst.msk [vmem:[%s197 + $0x10] sm:$0xff] %vm538, %v534
      %542 = vst.msk [vmem:[%s197 + $0x18] sm:$0xff] %vm538, %v535
      %543 = vst.msk [vmem:[%s197 + $0x20] sm:$0xff] %vm538, %v536
      %544 = vst.msk [vmem:[%s197 + $0x28] sm:$0xff] %vm538, %v537
      %p545 = scmp.lt.s32.totalorder %s15, 1
      %s546 = scalar_select %p545, %s15, 1
      %s547 = smul.addr %s546, 6
      %s548 = smul.addr %s547, 8
      %s549 = scalar_lea.vmem %s4, %s548
      // Predicated region
      $region37: #{tpu_custom_call.1} parent=35 // pred_check
        %p550 = pneg %p122
      $region38: #{tpu_custom_call.1} parent=35 // pred_check_branch
        %552 = sbr.rel (%p550) target = $region40
      $region39: #{tpu_custom_call.1} parent=35 // pred_region
        _
      $region40: #{tpu_custom_call.1} parent=35 // pred_fallthru
        _
    $region36: #{tpu_custom_call.1} parent=5 // pred_fallthru
      _
    %p553 = scmp.le.s32.totalorder 2, %s10
    // Predicated region
    $region41: #{tpu_custom_call.1} parent=5 // pred_check
      %p554 = pneg %p553
    $region42: #{tpu_custom_call.1} parent=5 // pred_check_branch
      %556 = sbr.rel (%p554) target = $region44
    $region43: #{tpu_custom_call.1} parent=5 // pred_region
      %s557 = ssub.s32 %s10, 2
      // Predicated region
      $region45: #{tpu_custom_call.1} parent=43 // pred_check
        %p558 = pneg %p128
      $region46: #{tpu_custom_call.1} parent=43 // pred_check_branch
        %560 = sbr.rel (%p558) target = $region48
      $region47: #{tpu_custom_call.1} parent=43 // pred_region
        %p561 = scmp.lt.s32.totalorder %s16, 1
        %s562 = scalar_select %p561, %s16, 1
        %s563 = smul.addr %s562, 6
        %s564 = smul.addr %s563, 8
        %s565 = scalar_lea.vmem %s4, %s564
      $region48: #{tpu_custom_call.1} parent=43 // pred_fallthru
        _
    $region44: #{tpu_custom_call.1} parent=5 // pred_fallthru
      _
  $region6: #{tpu_custom_call.1} parent=0 // loop_footer
    %s14 = sadd.s32 1, %s10
  $region7: #{tpu_custom_call.1} parent=0 // loop_footer_branch
    %9 = sbr.rel target = $region3
  $region8: #{tpu_custom_call.1} parent=0 // loop_exit
    _

</llo_original>
